<compile_context>
chip_gen: v7x
topology: tpu7x:2x2x1
jax: 0.10.0
libtpu: 0.0.40
codegen_flags: <defaults>
</compile_context>

<pallas_src>
import functools

import jax
import jax.numpy as jnp
from jax import lax
from jax.experimental import pallas as pl
from jax.experimental.pallas import tpu as pltpu


def _linear_kernel(x_ref, w_ref, b_ref, o_ref, *, tk, total_p):
    """One K-tile of y = x @ W.T + b, accumulating into the resident output.

    x_ref: (B_pad, tk)   w_ref: (E, tk)   b_ref: (1, E)   o_ref: (B_pad, E)
    """
    k = pl.program_id(0)

    @pl.when(k == 0)
    def _():
        o_ref[...] = jnp.zeros_like(o_ref)

    x = x_ref[...]
    w = w_ref[...]

    # Static check: only emit masking code if P is not a multiple of tk.
    # The last grid step's block extends past P; its padded contents are
    # undefined, so zero them out of the contraction.
    if total_p % tk != 0:
        col = k * tk + lax.broadcasted_iota(jnp.int32, (1, tk), 1)
        valid = col < total_p
        x = jnp.where(valid, x, 0.0)
        w = jnp.where(valid, w, 0.0)

    # Contract x (B_pad, tk) with w (E, tk) over the K axis -> (B_pad, E).
    o_ref[...] += lax.dot_general(
        x, w,
        dimension_numbers=(((1,), (1,)), ((), ())),
        preferred_element_type=jnp.float32,
    )

    @pl.when(k == pl.num_programs(0) - 1)
    def _():
        o_ref[...] += b_ref[...]


def linear_transform_embedding(
    flat_params, weight, bias, *,
    vmem_budget_bytes=16 * 1024 * 1024,   # double-buffered input blocks budget
    use_bf16=False,                        # stream x/W in bf16 (f32 accumulation)
):
    """nn.Linear forward: y = flat_params @ weight.T + bias.

    flat_params: (B, P)   weight: (E, P)   bias: (E,)   -> (B, E) float32
    """
    B, P = flat_params.shape
    E, P2 = weight.shape
    assert P == P2 and bias.shape == (E,)

    compute_dtype = jnp.bfloat16 if use_bf16 else jnp.float32
    x = flat_params.astype(compute_dtype)
    w = weight.astype(compute_dtype)
    b2 = bias.reshape(1, E).astype(jnp.float32)

    # Pad batch to a sublane multiple (8) — cheap layout hygiene (x << W).
    B_pad = max(8, ((B + 7) // 8) * 8)
    if B_pad != B:
        x = jnp.pad(x, ((0, B_pad - B), (0, 0)))

    # Choose the K tile: as large as fits the VMEM budget, counting the
    # double-buffered x and W input blocks. Never exceed (rounded-down) P so
    # block dims never exceed array dims; budget kept <= ~16 MiB so it is
    # safe on v7x's 64 MiB physical VMEM as well as v5e/v6e.
    itemsize = jnp.dtype(compute_dtype).itemsize
    bytes_per_k_col = (E + B_pad) * itemsize * 2   # x block + W block, x2 buffers
    tk = max(128, (vmem_budget_bytes // bytes_per_k_col) // 128 * 128)
    if P >= 128:
        tk = min(tk, (P // 128) * 128)
    else:
        tk = P                                      # single full-width block
    nk = pl.cdiv(P, tk)

    kernel = functools.partial(_linear_kernel, tk=tk, total_p=P)

    out = pl.pallas_call(
        kernel,
        out_shape=jax.ShapeDtypeStruct((B_pad, E), jnp.float32),
        grid_spec=pltpu.PrefetchScalarGridSpec(
            num_scalar_prefetch=0,
            grid=(nk,),
            in_specs=[
                pl.BlockSpec((B_pad, tk), lambda k: (0, k)),  # x K-tile
                pl.BlockSpec((E, tk), lambda k: (0, k)),      # W K-tile (no transpose)
                pl.BlockSpec((1, E), lambda k: (0, 0)),       # bias (resident)
            ],
            out_specs=pl.BlockSpec((B_pad, E), lambda k: (0, 0)),  # resident accumulator
        ),
        compiler_params=pltpu.CompilerParams(
            dimension_semantics=("arbitrary",),   # K is a reduction axis: keep serial
            vmem_limit_bytes=32 * 1024 * 1024,
        ),
    )(x, w, b2)

    return out[:B]


if __name__ == "__main__":
    # Synthetic "policy network": Linear(6->16) + Linear(16->4)
    #   params = 6*16 + 16 + 16*4 + 4 = 180  (deliberately not a multiple of 128
    #   to exercise the ragged-P tail masking).
    batch = 2
    policy_num_parameters = 6 * 16 + 16 + 16 * 4 + 4   # = 180
    embedding_size = 32

    key = jax.random.PRNGKey(0)
    kx, kw, kb = jax.random.split(key, 3)

    # Mimic nn.Linear's uniform init bound.
    bound = 1.0 / (policy_num_parameters ** 0.5)
    weight = jax.random.uniform(
        kw, (embedding_size, policy_num_parameters), jnp.float32,
        minval=-bound, maxval=bound)
    bias = jax.random.uniform(
        kb, (embedding_size,), jnp.float32, minval=-bound, maxval=bound)

    flat_params = jax.random.normal(
        kx, (batch, policy_num_parameters), jnp.float32)

    out = linear_transform_embedding(flat_params, weight, bias)
    out = jax.block_until_ready(out)

    # Reference check against plain JAX.
    ref = flat_params @ weight.T + bias
    assert out.shape == (batch, embedding_size)
    assert jnp.allclose(out, ref, atol=1e-5, rtol=1e-5)

    print("KERNEL_OK")
</pallas_src>

<mosaic_0001>
module attributes {stable_mosaic.version = 11 : i64} {
  func.func @_linear_kernel(%arg0: i32, %arg1: memref<8x128xf32, #tpu.memory_space<vmem>>, %arg2: memref<32x128xf32, #tpu.memory_space<vmem>>, %arg3: memref<1x32xf32, #tpu.memory_space<vmem>>, %arg4: memref<8x32xf32, #tpu.memory_space<vmem>>) attributes {dimension_semantics = [#tpu.dimension_semantics<arbitrary>], iteration_bounds = array<i64: 2>, scalar_prefetch = 0 : i64, scratch_operands = 0 : i64, tpu.core_type = #tpu.core_type<tc>, window_params = [{transform_indices = @transform_0, window_bounds = array<i64: 8, 128>}, {transform_indices = @transform_1, window_bounds = array<i64: 32, 128>}, {pipeline_mode = #tpu.pipeline_mode<synchronous>, transform_indices = @transform_2, window_bounds = array<i64: 1, 32>}, {pipeline_mode = #tpu.pipeline_mode<synchronous>, transform_indices = @transform_3, window_bounds = array<i64: 8, 32>}]} {
    %c0_i32 = arith.constant 0 : i32
    %0 = arith.cmpi eq, %arg0, %c0_i32 : i32
    %1 = arith.extui %0 : i1 to i32
    %c0_i32_0 = arith.constant 0 : i32
    %2 = arith.cmpi ne, %1, %c0_i32_0 : i32
    scf.if %2 {
      %cst_11 = arith.constant 0.000000e+00 : f32
      %26 = vector.broadcast %cst_11 : f32 to vector<8x32xf32>
      %c0_12 = arith.constant 0 : index
      %c0_13 = arith.constant 0 : index
      %27 = vector.load %arg4[%c0_12, %c0_13] : memref<8x32xf32, #tpu.memory_space<vmem>>, vector<8x32xf32>
      tpu.vector_store %arg4[%c0_12, %c0_13], %26 {strides = array<i32>} : memref<8x32xf32, #tpu.memory_space<vmem>>, vector<8x32xf32>,
    } else {
    }
    %c0 = arith.constant 0 : index
    %c0_1 = arith.constant 0 : index
    %3 = vector.load %arg1[%c0, %c0_1] : memref<8x128xf32, #tpu.memory_space<vmem>>, vector<8x128xf32>
    %c0_2 = arith.constant 0 : index
    %c0_3 = arith.constant 0 : index
    %4 = vector.load %arg2[%c0_2, %c0_3] : memref<32x128xf32, #tpu.memory_space<vmem>>, vector<32x128xf32>
    %c128_i32 = arith.constant 128 : i32
    %5 = arith.muli %arg0, %c128_i32 : i32
    %6 = tpu.iota {dimensions = array<i32: 1>} : vector<1x128xi32>
    %7 = vector.broadcast %5 : i32 to vector<1x128xi32>
    %8 = arith.addi %7, %6 : vector<1x128xi32>
    %c180_i32 = arith.constant 180 : i32
    %9 = vector.broadcast %c180_i32 : i32 to vector<1x128xi32>
    %10 = arith.cmpi slt, %8, %9 : vector<1x128xi32>
    %cst = arith.constant 0.000000e+00 : f32
    %11 = vector.shape_cast %10 : vector<1x128xi1> to vector<1x128xi1>
    %12 = vector.broadcast %11 : vector<1x128xi1> to vector<8x128xi1>
    %13 = vector.broadcast %cst : f32 to vector<8x128xf32>
    %14 = arith.select %12, %3, %13 : vector<8x128xi1>, vector<8x128xf32>
    %cst_4 = arith.constant 0.000000e+00 : f32
    %15 = vector.shape_cast %10 : vector<1x128xi1> to vector<1x128xi1>
    %16 = vector.broadcast %15 : vector<1x128xi1> to vector<32x128xi1>
    %17 = vector.broadcast %cst_4 : f32 to vector<32x128xf32>
    %18 = arith.select %16, %4, %17 : vector<32x128xi1>, vector<32x128xf32>
    %c0_5 = arith.constant 0 : index
    %c0_6 = arith.constant 0 : index
    %19 = vector.load %arg4[%c0_5, %c0_6] : memref<8x32xf32, #tpu.memory_space<vmem>>, vector<8x32xf32>
    %cst_7 = arith.constant dense<0.000000e+00> : vector<8x32xf32>
    %20 = tpu.matmul %14, %18, %cst_7 {dimension_numbers = #tpu.dot_dimension_numbers<[1], [1], [0], [0], [0, 0, 1, 0], [], []>} : vector<8x128xf32>, vector<32x128xf32>, vector<8x32xf32> -> vector<8x32xf32>
    %21 = arith.addf %19, %20 : vector<8x32xf32>
    %c0_8 = arith.constant 0 : index
    %c0_9 = arith.constant 0 : index
    %22 = vector.load %arg4[%c0_8, %c0_9] : memref<8x32xf32, #tpu.memory_space<vmem>>, vector<8x32xf32>
    tpu.vector_store %arg4[%c0_8, %c0_9], %21 {strides = array<i32>} : memref<8x32xf32, #tpu.memory_space<vmem>>, vector<8x32xf32>,
    %c1_i32 = arith.constant 1 : i32
    %23 = arith.cmpi eq, %arg0, %c1_i32 : i32
    %24 = arith.extui %23 : i1 to i32
    %c0_i32_10 = arith.constant 0 : i32
    %25 = arith.cmpi ne, %24, %c0_i32_10 : i32
    scf.if %25 {
      %c0_11 = arith.constant 0 : index
      %c0_12 = arith.constant 0 : index
      %26 = vector.load %arg4[%c0_11, %c0_12] : memref<8x32xf32, #tpu.memory_space<vmem>>, vector<8x32xf32>
      %c0_13 = arith.constant 0 : index
      %c0_14 = arith.constant 0 : index
      %27 = vector.load %arg3[%c0_13, %c0_14] : memref<1x32xf32, #tpu.memory_space<vmem>>, vector<1x32xf32>
      %28 = vector.broadcast %27 : vector<1x32xf32> to vector<8x32xf32>
      %29 = arith.addf %26, %28 : vector<8x32xf32>
      %c0_15 = arith.constant 0 : index
      %c0_16 = arith.constant 0 : index
      %30 = vector.load %arg4[%c0_15, %c0_16] : memref<8x32xf32, #tpu.memory_space<vmem>>, vector<8x32xf32>
      tpu.vector_store %arg4[%c0_15, %c0_16], %29 {strides = array<i32>} : memref<8x32xf32, #tpu.memory_space<vmem>>, vector<8x32xf32>,
    } else {
    }
    return
  }
  func.func @transform_0(%arg0: i32) -> (i32, i32) {
    %c0_i32 = arith.constant 0 : i32
    %c0_i32_0 = arith.constant 0 : i32
    return %c0_i32, %arg0 : i32, i32
  }
  func.func @transform_1(%arg0: i32) -> (i32, i32) {
    %c0_i32 = arith.constant 0 : i32
    %c0_i32_0 = arith.constant 0 : i32
    return %c0_i32, %arg0 : i32, i32
  }
  func.func @transform_2(%arg0: i32) -> (i32, i32) {
    %c0_i32 = arith.constant 0 : i32
    %c0_i32_0 = arith.constant 0 : i32
    %c0_i32_1 = arith.constant 0 : i32
    return %c0_i32, %c0_i32_0 : i32, i32
  }
  func.func @transform_3(%arg0: i32) -> (i32, i32) {
    %c0_i32 = arith.constant 0 : i32
    %c0_i32_0 = arith.constant 0 : i32
    %c0_i32_1 = arith.constant 0 : i32
    return %c0_i32, %c0_i32_0 : i32, i32
  }
}

</mosaic_0001>

<llo_original>
// kernel: tpu_custom_call.1
$region0: #{tpu_custom_call.1}
  #allocation0 [shape = 'u32[]', space=smem, size = 0x4, offset = 0x4, fixed_abs, tag = 'smem constant byte address 0x4 - core index']
  #allocation1 [shape = 'u32[144,128]{1,0:T(1,128)}', space=vmem, size = 0x12000, scoped, tag = 'internal scratch']
  %s0 = inlined_call_operand.hbm [shape: f32[8,180], index: 0, kind: input, shape index: {}]
  %s1 = inlined_call_operand.hbm [shape: f32[32,180], index: 1, kind: input, shape index: {}]
  %s2 = inlined_call_operand.vmem [shape: f32[1,32], index: 2, kind: input, shape index: {}]
  %s3 = inlined_call_operand.hbm [shape: f32[8,32], index: 3, kind: output, shape index: {}]
  %s4 = sld [smem:[#allocation0]]
  $region61: #{tpu_custom_call.1} parent=0
    _
  %s6 = ssub.s32 1, %s4
  %s7 = scalar_select 0, %s6, %s4
  $region1: #{tpu_custom_call.1} parent=0
    #allocation2 [shape = 'u8[8192]{0}', space=vmem, size = 0x2000, scoped, tag = 'input window, operand 0']
    #allocation3 [shape = 's32[2]{0}', space=sflag, size = 0x8, scoped, tag = 'scoped memory for tpu_custom_call.1']
    #allocation4 [shape = 's32[2]{0}', space=sflag, size = 0x8, scoped, tag = 'scoped memory for tpu_custom_call.1']
    #allocation5 [shape = 'u8[32768]{0}', space=vmem, size = 0x8000, scoped, tag = 'input window, operand 1']
    #allocation6 [shape = 's32[2]{0}', space=sflag, size = 0x8, scoped, tag = 'scoped memory for tpu_custom_call.1']
    #allocation7 [shape = 'u8[4096]{0}', space=vmem, size = 0x1000, scoped, tag = 'output window, operand 0, single buffered']
    %8 = vsyncpa [#allocation3], 0
    %s9 = scalar_lea.sflag [#allocation3], 1
    %10 = vsyncpa %s9, 0
    %11 = vsyncpa [#allocation6], 0
    %s12 = scalar_lea.sflag [#allocation6], 1
    %13 = vsyncpa %s12, 0
    %14 = vsyncpa [#allocation4], 0
    loop: start=0, step=1, limit=4
    $region2: #{tpu_custom_call.1} parent=1 // loop_pre_header
      _
    $region3: #{tpu_custom_call.1} parent=1 // loop_header
      %s16 = sphi 0, %s20
      %p17 = scmp.ge.s32.totalorder %s16, 4
      %s26 = sphi 0, %s28
      %s29 = sphi 0, %s26
      %s30 = sphi 0, %s29
      %s46 = sphi 0, %s30
      %s52 = sphi 0, %s54
      %s55 = sphi 0, %s52
      %s56 = sphi 0, %s55
      %s72 = sphi 0, %s56
      %s76 = sphi 0, %s76
      %s78 = sphi 0, %s76
      %s79 = sphi 0, %s78
      %s93 = sphi 0, %s79
      %s97 = sphi 0, %s97
      %s99 = sphi 0, %s97
      %s100 = sphi 0, %s99
      %s114 = sphi 0, %s100
    $region4: #{tpu_custom_call.1} parent=1 // loop_header_branch
      %19 = sbr.rel (%p17) target = $region8
    $region5: #{tpu_custom_call.1} parent=1 // loop_body
      %s21 = ssub.s32 %s16, 1
      %s22 = ssub.s32 %s16, 2
      %s23 = sadd.s32 %s16, 1
      %s24 = ssub.s32 %s16, %s23
      %p25 = scmp.eq.s32.totalorder %s24, 0
      %s27 = sadd.s32 %s26, 1
      %s28 = scalar_select %p25, %s26, %s27
      %p31 = pneg %p25
      %p32 = scmp.eq.s32.totalorder %s16, 1
      %p33 = por %p31, %p32
      %p34 = scmp.ne.s32.totalorder %s26, %s29
      %p35 = scmp.eq.s32.totalorder %s16, 0
      %p36 = por %p34, %p35
      %p37 = scmp.ne.s32.totalorder %s26, %s29
      %p38 = scmp.eq.s32.totalorder %s21, 1
      %p39 = por %p37, %p38
      %p40 = scmp.ne.s32.totalorder %s29, %s30
      %p41 = scmp.eq.s32.totalorder %s21, 0
      %p42 = por %p40, %p41
      %p43 = scmp.ne.s32.totalorder %s29, %s30
      %p44 = scmp.eq.s32.totalorder %s22, 1
      %p45 = por %p43, %p44
      %p47 = scmp.ne.s32.totalorder %s30, %s46
      %p48 = scmp.eq.s32.totalorder %s22, 0
      %p49 = por %p47, %p48
      %s50 = ssub.s32 %s16, %s23
      %p51 = scmp.eq.s32.totalorder %s50, 0
      %s53 = sadd.s32 %s52, 1
      %s54 = scalar_select %p51, %s52, %s53
      %p57 = pneg %p51
      %p58 = scmp.eq.s32.totalorder %s16, 1
      %p59 = por %p57, %p58
      %p60 = scmp.ne.s32.totalorder %s52, %s55
      %p61 = scmp.eq.s32.totalorder %s16, 0
      %p62 = por %p60, %p61
      %p63 = scmp.ne.s32.totalorder %s52, %s55
      %p64 = scmp.eq.s32.totalorder %s21, 1
      %p65 = por %p63, %p64
      %p66 = scmp.ne.s32.totalorder %s55, %s56
      %p67 = scmp.eq.s32.totalorder %s21, 0
      %p68 = por %p66, %p67
      %p69 = scmp.ne.s32.totalorder %s55, %s56
      %p70 = scmp.eq.s32.totalorder %s22, 1
      %p71 = por %p69, %p70
      %p73 = scmp.ne.s32.totalorder %s56, %s72
      %p74 = scmp.eq.s32.totalorder %s22, 0
      %p75 = por %p73, %p74
      %s77 = sadd.s32 %s76, 1
      %p80 = scmp.eq.s32.totalorder %s16, 1
      %p81 = scmp.ne.s32.totalorder %s76, %s78
      %p82 = scmp.eq.s32.totalorder %s16, 0
      %p83 = por %p81, %p82
      %p84 = scmp.ne.s32.totalorder %s76, %s78
      %p85 = scmp.eq.s32.totalorder %s21, 1
      %p86 = por %p84, %p85
      %p87 = scmp.ne.s32.totalorder %s78, %s79
      %p88 = scmp.eq.s32.totalorder %s21, 0
      %p89 = por %p87, %p88
      %p90 = scmp.ne.s32.totalorder %s78, %s79
      %p91 = scmp.eq.s32.totalorder %s22, 1
      %p92 = por %p90, %p91
      %p94 = scmp.ne.s32.totalorder %s79, %s93
      %p95 = scmp.eq.s32.totalorder %s22, 0
      %p96 = por %p94, %p95
      %s98 = sadd.s32 %s97, 1
      %p101 = scmp.eq.s32.totalorder %s16, 1
      %p102 = scmp.ne.s32.totalorder %s97, %s99
      %p103 = scmp.eq.s32.totalorder %s16, 0
      %p104 = por %p102, %p103
      %p105 = scmp.ne.s32.totalorder %s97, %s99
      %p106 = scmp.eq.s32.totalorder %s21, 1
      %p107 = por %p105, %p106
      %p108 = scmp.ne.s32.totalorder %s99, %s100
      %p109 = scmp.eq.s32.totalorder %s21, 0
      %p110 = por %p108, %p109
      %p111 = scmp.ne.s32.totalorder %s99, %s100
      %p112 = scmp.eq.s32.totalorder %s22, 1
      %p113 = por %p111, %p112
      %p115 = scmp.ne.s32.totalorder %s100, %s114
      %p116 = scmp.eq.s32.totalorder %s22, 0
      %p117 = por %p115, %p116
      %p118 = scmp.le.s32.totalorder 1, %s16
      %p119 = scmp.lt.s32.totalorder %s16, 3
      %p120 = pnand %p118, %p119
      %p121 = pneg %p120
      // Predicated region
      $region9: #{tpu_custom_call.1} parent=5 // pred_check
        _
      $region10: #{tpu_custom_call.1} parent=5 // pred_check_branch
        %123 = sbr.rel (%p120) target = $region12
      $region11: #{tpu_custom_call.1} parent=5 // pred_region
        %s124 = ssub.s32 %s16, 1
        // Predicated region
        $region13: #{tpu_custom_call.1} parent=11 // pred_check
          %p125 = pneg %p89
        $region14: #{tpu_custom_call.1} parent=11 // pred_check_branch
          %127 = sbr.rel (%p125) target = $region16
        $region15: #{tpu_custom_call.1} parent=11 // pred_region
          _
        $region16: #{tpu_custom_call.1} parent=11 // pred_fallthru
          _
      $region12: #{tpu_custom_call.1} parent=5 // pred_fallthru
        _
      %p128 = scmp.lt.s32.totalorder %s16, 2
      // Predicated region
      $region17: #{tpu_custom_call.1} parent=5 // pred_check
        %p129 = pneg %p128
      $region18: #{tpu_custom_call.1} parent=5 // pred_check_branch
        %131 = sbr.rel (%p129) target = $region20
      $region19: #{tpu_custom_call.1} parent=5 // pred_region
        // Predicated region
        $region21: #{tpu_custom_call.1} parent=19 // pred_check
          %p132 = pneg %p36
        $region22: #{tpu_custom_call.1} parent=19 // pred_check_branch
          %134 = sbr.rel (%p132) target = $region24
        $region23: #{tpu_custom_call.1} parent=19 // pred_region
          %s135 = sand.u32 %s26, 1
          %s136 = scalar_lea.sflag [#allocation3], %s135
          %s137 = sand.u32 %s26, 1
          %s138 = smul.addr %s137, 8
          %s139 = scalar_lea.vmem [#allocation2], %s138
          %s141 = ssub.s32 128, 128
          %142 = vsyncadd %s136, %s141
          %s143 = smul.addr %s16, 128
          %s144 = scalar_lea.hbm %s0, %s143
          %s146 = sshll.u32 %s139, 4
          %s147 = int_to_ptr.vmem [resolvable:$true] %s146
          %149 = dma.hbm_to_vmem [thread:$0]  %s144, 128, %s147, %s136
        $region24: #{tpu_custom_call.1} parent=19 // pred_fallthru
          _
        // Predicated region
        $region25: #{tpu_custom_call.1} parent=19 // pred_check
          %p150 = pneg %p62
        $region26: #{tpu_custom_call.1} parent=19 // pred_check_branch
          %152 = sbr.rel (%p150) target = $region28
        $region27: #{tpu_custom_call.1} parent=19 // pred_region
          %s153 = sand.u32 %s52, 1
          %s154 = scalar_lea.sflag [#allocation6], %s153
          %s155 = sand.u32 %s52, 1
          %s156 = smul.addr %s155, 32
          %s157 = scalar_lea.vmem [#allocation5], %s156
          %s159 = ssub.s32 512, 512
          %160 = vsyncadd %s154, %s159
          %s161 = smul.addr %s16, 128
          %s162 = scalar_lea.hbm %s1, %s161
          %s163 = sshll.u32 %s157, 4
          %s164 = int_to_ptr.vmem [resolvable:$true] %s163
          %169 = dma.hbm_to_vmem [thread:$0]  %s162, 512, %s164, %s154, 256, 128, 8
        $region28: #{tpu_custom_call.1} parent=19 // pred_fallthru
          _
      $region20: #{tpu_custom_call.1} parent=5 // pred_fallthru
        _
      %p170 = scmp.le.s32.totalorder 1, %s16
      %p171 = scmp.lt.s32.totalorder %s16, 3
      %p172 = pnand %p170, %p171
      %p173 = pneg %p172
      // Predicated region
      $region29: #{tpu_custom_call.1} parent=5 // pred_check
        _
      $region30: #{tpu_custom_call.1} parent=5 // pred_check_branch
        %175 = sbr.rel (%p172) target = $region32
      $region31: #{tpu_custom_call.1} parent=5 // pred_region
        %s176 = ssub.s32 %s16, 1
        %s177 = sand.u32 %s29, 1
        %s178 = scalar_lea.sflag [#allocation3], %s177
        %s179 = sand.u32 %s29, 1
        %s180 = smul.addr %s179, 8
        %s181 = scalar_lea.vmem [#allocation2], %s180
        // Predicated region
        $region33: #{tpu_custom_call.1} parent=31 // pred_check
          %p182 = pneg %p42
        $region34: #{tpu_custom_call.1} parent=31 // pred_check_branch
          %184 = sbr.rel (%p182) target = $region36
        $region35: #{tpu_custom_call.1} parent=31 // pred_region
          %185 = dma.done %s178, 128
        $region36: #{tpu_custom_call.1} parent=31 // pred_fallthru
          _
        %s186 = sand.u32 %s55, 1
        %s187 = scalar_lea.sflag [#allocation6], %s186
        %s188 = sand.u32 %s55, 1
        %s189 = smul.addr %s188, 32
        %s190 = scalar_lea.vmem [#allocation5], %s189
        // Predicated region
        $region37: #{tpu_custom_call.1} parent=31 // pred_check
          %p191 = pneg %p68
        $region38: #{tpu_custom_call.1} parent=31 // pred_check_branch
          %193 = sbr.rel (%p191) target = $region40
        $region39: #{tpu_custom_call.1} parent=31 // pred_region
          %194 = dma.done %s187, 512
        $region40: #{tpu_custom_call.1} parent=31 // pred_fallthru
          _
        %s195 = sand.u32 %s29, 1
        %s196 = scalar_lea.sflag [#allocation3], %s195
        %s197 = sand.u32 %s29, 1
        %s198 = smul.addr %s197, 8
        %s199 = scalar_lea.vmem [#allocation2], %s198
        %p200 = pneg %p42
        %p201 = pneg %p39
        %s202 = sand.u32 %s55, 1
        %s203 = scalar_lea.sflag [#allocation6], %s202
        %s204 = sand.u32 %s55, 1
        %s205 = smul.addr %s204, 32
        %s206 = scalar_lea.vmem [#allocation5], %s205
        %p207 = pneg %p68
        %p208 = pneg %p65
        %p209 = pneg %p89
        %p210 = pneg %p86
        %p211 = pneg %p110
        %p212 = pneg %p107
        %p213 = scmp.eq.s32.totalorder %s21, 0
        // Predicated region
        $region41: #{tpu_custom_call.1} parent=31 // pred_check
          %p214 = pneg %p213
        $region42: #{tpu_custom_call.1} parent=31 // pred_check_branch
          %216 = sbr.rel (%p214) target = $region44
        $region43: #{tpu_custom_call.1} parent=31 // pred_region
          %vm217 = vcmask 261120
          %218 = vst.msk [vmem:[#allocation7] sm:$0xff] %vm217, 0.0
        $region44: #{tpu_custom_call.1} parent=31 // pred_fallthru
          _
        %v219 = vld [vmem:[%s181] sm:$0xff]
        %v220 = vld [vmem:[%s190] sm:$0xff]
        %v221 = vld [vmem:[%s190 + $0x8] sm:$0xff]
        %v222 = vld [vmem:[%s190 + $0x10] sm:$0xff]
        %v223 = vld [vmem:[%s190 + $0x18] sm:$0xff]
        %s224 = smul.u32 %s21, 128
        %v225 = vlaneseq
        %v226 = vand.u32 %v225, 127
        %v227 = vstv %s224
        %v228 = vadd.s32 %v227, %v226
        %vm229 = vcmp.lt.s32.totalorder %v228, 180
        %v230 = vsel %vm229, 1, 0
        %vm231 = vcmp.eq.s32.totalorder %v230, 1
        %v232 = vsel %vm231, %v219, 0.0
        %v233 = vsel %vm231, %v220, 0.0
        %v234 = vsel %vm231, %v221, 0.0
        %v235 = vsel %vm231, %v222, 0.0
        %v236 = vsel %vm231, %v223, 0.0
        %v237 = vld [vmem:[#allocation7] sm:$0xff]
        %238 = vmatprep.subr.mxu0 0.0
        %239 = vmatpush1.xpose.msra.mxu0 %v233
        %240 = vmatprep.subr.mxu0 0.0
        %241 = vmatpush1.xpose.msra.mxu0 %v234
        %242 = vmatprep.subr.mxu0 0.0
        %243 = vmatpush1.xpose.msra.mxu0 %v235
        %244 = vmatprep.subr.mxu0 0.0
        %245 = vmatpush1.xpose.msra.mxu0 %v236
        %246 = vmatprep.subr.mxu0 0.0
        %247 = vmatpush1.xpose.msra.mxu0 0.0
        %248 = vmatprep.subr.mxu0 0.0
        %249 = vmatpush1.xpose.msra.mxu0 0.0
        %250 = vmatprep.subr.mxu0 0.0
        %251 = vmatpush1.xpose.msra.mxu0 0.0
        %252 = vmatprep.subr.mxu0 0.0
        %253 = vmatpush1.xpose.msra.mxu0 0.0
        %254 = vmatprep.subr.mxu0 0.0
        %255 = vmatpush1.xpose.msra.mxu0 0.0
        %256 = vmatprep.subr.mxu0 0.0
        %257 = vmatpush1.xpose.msra.mxu0 0.0
        %258 = vmatprep.subr.mxu0 0.0
        %259 = vmatpush1.xpose.msra.mxu0 0.0
        %260 = vmatprep.subr.mxu0 0.0
        %261 = vmatpush1.xpose.msra.mxu0 0.0
        %262 = vmatprep.subr.mxu0 0.0
        %263 = vmatpush1.xpose.msra.mxu0 0.0
        %264 = vmatprep.subr.mxu0 0.0
        %265 = vmatpush1.xpose.msra.mxu0 0.0
        %266 = vmatprep.subr.mxu0 0.0
        %267 = vmatpush1.xpose.msra.mxu0 0.0
        %268 = vmatprep.subr.mxu0 0.0
        %269 = vmatpush1.xpose.msra.mxu0 0.0
        %270 = vmatprep.subr.mxu0 0.0
        %271 = vmatpush1.xpose.msra.mxu0 0.0
        %272 = vmatprep.subr.mxu0 0.0
        %273 = vmatpush1.xpose.msra.mxu0 0.0
        %274 = vmatprep.subr.mxu0 0.0
        %275 = vmatpush1.xpose.msra.mxu0 0.0
        %276 = vmatprep.subr.mxu0 0.0
        %277 = vmatpush1.xpose.msra.mxu0 0.0
        %278 = vmatprep.subr.mxu0 0.0
        %279 = vmatpush1.xpose.msra.mxu0 0.0
        %280 = vmatprep.subr.mxu0 0.0
        %281 = vmatpush1.xpose.msra.mxu0 0.0
        %282 = vmatprep.subr.mxu0 0.0
        %283 = vmatpush1.xpose.msra.mxu0 0.0
        %284 = vmatprep.subr.mxu0 0.0
        %285 = vmatpush1.xpose.msra.mxu0 0.0
        %286 = vmatprep.subr.mxu0 0.0
        %287 = vmatpush1.xpose.msra.mxu0 0.0
        %288 = vmatprep.subr.mxu0 0.0
        %289 = vmatpush1.xpose.msra.mxu0 0.0
        %290 = vmatprep.subr.mxu0 0.0
        %291 = vmatpush1.xpose.msra.mxu0 0.0
        %292 = vmatprep.subr.mxu0 0.0
        %293 = vmatpush1.xpose.msra.mxu0 0.0
        %294 = vmatprep.subr.mxu0 0.0
        %295 = vmatpush1.xpose.msra.mxu0 0.0
        %296 = vmatprep.subr.mxu0 0.0
        %297 = vmatpush1.xpose.msra.mxu0 0.0
        %298 = vmatprep.subr.mxu0 0.0
        %299 = vmatpush1.xpose.msra.mxu0 0.0
        %300 = vmatprep.subr.mxu0 0.0
        %301 = vmatpush1.xpose.msra.mxu0 0.0
        %302 = vmatprep.mubr.f32.mxu0 0.0
        %303 = vmatmul.mubr.f32.gmra.mrb[0].mxu0 %v232
        %v304 = vpop.f32.mrb[0].mxu0
        %v305 = vadd.f32 0.0, %v304
        %v306 = vpop.f32.mrb[0].mxu0
        %307 = vdwg.mxu0
        %v308 = vadd.f32 %v237, %v305
        %vm309 = vcmask 261120
        %310 = vst.msk [vmem:[#allocation7] sm:$0xff] %vm309, %v308
        %p311 = scmp.eq.s32.totalorder %s21, 1
        // Predicated region
        $region45: #{tpu_custom_call.1} parent=31 // pred_check
          %p312 = pneg %p311
        $region46: #{tpu_custom_call.1} parent=31 // pred_check_branch
          %314 = sbr.rel (%p312) target = $region48
        $region47: #{tpu_custom_call.1} parent=31 // pred_region
          %v315 = vld [vmem:[#allocation7] sm:$0xff]
          %v316 = vld [vmem:[%s2] sm:$0x1]
          %v318 = vlaneseq
          %v319 = vshrl.u32 %v318, 7
          %v320 = vsub.s32 0, %v319
          %v321 = vrot.slane %v316, %v320
          %v323 = vadd.f32 %v315, %v321
          %324 = vst.msk [vmem:[#allocation7] sm:$0xff] %vm309, %v323
        $region48: #{tpu_custom_call.1} parent=31 // pred_fallthru
          _
        // Predicated region
        $region49: #{tpu_custom_call.1} parent=31 // pred_check
          %p325 = pneg %p107
        $region50: #{tpu_custom_call.1} parent=31 // pred_check_branch
          %327 = sbr.rel (%p325) target = $region52
        $region51: #{tpu_custom_call.1} parent=31 // pred_region
          %s329 = ssub.s32 128, 128
          %330 = vsyncadd [#allocation4], %s329
          %s332 = sshll.u32 [#allocation7], 4
          %s333 = int_to_ptr.vmem [resolvable:$true] %s332
          %335 = dma.vmem_to_hbm [thread:$0]  %s333, 128, %s3, [#allocation4]
        $region52: #{tpu_custom_call.1} parent=31 // pred_fallthru
          _
        // Predicated region
        $region53: #{tpu_custom_call.1} parent=31 // pred_check
          %p336 = pneg %p107
        $region54: #{tpu_custom_call.1} parent=31 // pred_check_branch
          %338 = sbr.rel (%p336) target = $region56
        $region55: #{tpu_custom_call.1} parent=31 // pred_region
          %339 = dma.done [#allocation4], 128
        $region56: #{tpu_custom_call.1} parent=31 // pred_fallthru
          _
      $region32: #{tpu_custom_call.1} parent=5 // pred_fallthru
        _
      %p340 = scmp.le.s32.totalorder 2, %s16
      // Predicated region
      $region57: #{tpu_custom_call.1} parent=5 // pred_check
        %p341 = pneg %p340
      $region58: #{tpu_custom_call.1} parent=5 // pred_check_branch
        %343 = sbr.rel (%p341) target = $region60
      $region59: #{tpu_custom_call.1} parent=5 // pred_region
        %s344 = ssub.s32 %s16, 2
      $region60: #{tpu_custom_call.1} parent=5 // pred_fallthru
        _
    $region6: #{tpu_custom_call.1} parent=1 // loop_footer
      %s20 = sadd.s32 1, %s16
    $region7: #{tpu_custom_call.1} parent=1 // loop_footer_branch
      %15 = sbr.rel target = $region3
    $region8: #{tpu_custom_call.1} parent=1 // loop_exit
      _
    %345 = vsyncpa [#allocation3], 1
    %s346 = scalar_lea.sflag [#allocation3], 1
    %347 = vsyncpa %s346, 1
    %348 = vsyncpa [#allocation6], 1
    %s349 = scalar_lea.sflag [#allocation6], 1
    %350 = vsyncpa %s349, 1
    %351 = vsyncpa [#allocation4], 1
    %s352 = scalar_lea.sflag [#allocation4], 1
    %353 = vsyncpa %s352, 1

</llo_original>
